<compile_context>
chip_gen: v5e
topology: v5e:2x2
jax: 0.10.0
libtpu: 0.0.40
codegen_flags: <defaults>
</compile_context>

<pallas_src>
import functools

import jax
import jax.numpy as jnp
from jax.experimental import pallas as pl
from jax.experimental.pallas import tpu as pltpu


def _sigmoid(x):
    # Single-EUP-op logistic: sigmoid(x) == 0.5 * tanh(0.5 * x) + 0.5
    return 0.5 * jnp.tanh(0.5 * x) + 0.5


def _mlp_kernel(xt_ref, w1_ref, b1_ref, w2_ref, w3_ref, o_ref, *, balancing_bias):
    # xt_ref: (in_dim, block_b)   -- x transposed, batch on lanes (native dtype)
    # w1_ref: (h1, in_dim)        -- PyTorch nn.Linear layout
    # b1_ref: (h1, 1)
    # w2_ref: (h2, h1)
    # w3_ref: (out_dim, h2)
    # o_ref:  (out_dim, block_b)  -- transposed output, lane-dense
    xt = xt_ref[...]

    # Layer 1: (h1, block_b) = sigmoid(W1 @ x^T + b1) ; natural MXU orientation.
    h1 = jnp.dot(w1_ref[...], xt, preferred_element_type=jnp.float32)
    h1 = _sigmoid(h1 + b1_ref[...])          # (h1, 1) broadcasts over lanes
    if balancing_bias:
        h1 = h1 - 1.0

    # Layer 2: (h2, block_b) = sigmoid(W2 @ h1)
    h2 = _sigmoid(jnp.dot(w2_ref[...], h1, preferred_element_type=jnp.float32))

    # Output:  (out_dim, block_b) = sigmoid(W3 @ h2)
    out = _sigmoid(jnp.dot(w3_ref[...], h2, preferred_element_type=jnp.float32))

    o_ref[...] = out.astype(o_ref.dtype)


def general_logistic_nn_forward(x, w1, b1, w2, w3, *, balancing_bias=False,
                                block_b=8192, x_transposed=False,
                                return_transposed=False):
    """Forward pass of GeneralLogisticNN.

    x: (B, input_size)   (or (input_size, B) if x_transposed=True).
    w1: (h1, in), b1: (h1,), w2: (h2, h1), w3: (out, h2) -- PyTorch nn.Linear
    layout, consumed as-is.  Returns (B, out) f32 (or (out, B) if
    return_transposed=True).
    """
    if x_transposed:
        xt = x
        in_dim, B = x.shape
    else:
        B, in_dim = x.shape
        # One producer-side transpose so the kernel sees (in_dim, B).  Callers
        # that can produce x in this layout should pass x_transposed=True.
        xt = x.T

    h1_dim = w1.shape[0]
    h2_dim = w2.shape[0]
    out_dim = w3.shape[0]

    # --- batch tile selection ---------------------------------------------
    # * multiple of 128 (lane width) whenever the grid has more than 1 step,
    # * >= 2 grid steps once B > 256 so the "parallel" axis can shard across
    #   the two v7x TensorCores,
    # * no padding of x: pl.cdiv grid + Pallas block clipping handles the
    #   ragged final block (safe: batch is the matmul N dim, tail is masked).
    block_b_req = max(128, (int(block_b) // 128) * 128)
    if B <= 256:
        block_b_eff = B          # single full-extent block (no 128 constraint)
    else:
        half_up = ((-(-B // 2) + 127) // 128) * 128
        block_b_eff = min(block_b_req, half_up)
    n_blocks = pl.cdiv(B, block_b_eff)

    b1c = jnp.reshape(b1, (h1_dim, 1))  # broadcast over the batch/lane axis

    kernel = functools.partial(_mlp_kernel, balancing_bias=balancing_bias)

    out_t = pl.pallas_call(
        kernel,
        out_shape=jax.ShapeDtypeStruct((out_dim, B), jnp.float32),
        grid_spec=pltpu.PrefetchScalarGridSpec(
            num_scalar_prefetch=0,
            grid=(n_blocks,),
            in_specs=[
                pl.BlockSpec((in_dim, block_b_eff), lambda i: (0, i)),  # x^T tile
                pl.BlockSpec((h1_dim, in_dim),      lambda i: (0, 0)),  # W1 (resident)
                pl.BlockSpec((h1_dim, 1),           lambda i: (0, 0)),  # b1
                pl.BlockSpec((h2_dim, h1_dim),      lambda i: (0, 0)),  # W2
                pl.BlockSpec((out_dim, h2_dim),     lambda i: (0, 0)),  # W3
            ],
            out_specs=pl.BlockSpec((out_dim, block_b_eff), lambda i: (0, i)),
        ),
        compiler_params=pltpu.CompilerParams(
            dimension_semantics=("parallel",)),
    )(xt, w1, b1c, w2, w3)

    if return_transposed:
        return out_t              # (out_dim, B), lane-dense
    return out_t.T                # (B, out_dim), PyTorch layout


def _reference_forward(x, w1, b1, w2, w3, balancing_bias=False):
    h = jax.nn.sigmoid(x @ w1.T + b1)
    if balancing_bias:
        h = h - 1.0
    h = jax.nn.sigmoid(h @ w2.T)
    return jax.nn.sigmoid(h @ w3.T)


if __name__ == "__main__":
    # Small shapes consistent with the MLP: input=16, h1=32, h2=32, out=4.
    IN, H1, H2, OUT = 16, 32, 32, 4

    key = jax.random.PRNGKey(0)
    kx, k1, kb, k2, k3, kx2 = jax.random.split(key, 6)

    # Deterministic synthetic parameters (PyTorch nn.Linear weight shapes).
    w1 = jax.random.normal(k1, (H1, IN), dtype=jnp.float32) * 0.2
    b1 = jax.random.normal(kb, (H1,), dtype=jnp.float32) * 0.1
    w2 = jax.random.normal(k2, (H2, H1), dtype=jnp.float32) * 0.2
    w3 = jax.random.normal(k3, (OUT, H2), dtype=jnp.float32) * 0.2

    # --- small batch, single block ---
    B = 64
    x = jax.random.normal(kx, (B, IN), dtype=jnp.float32)

    y = general_logistic_nn_forward(x, w1, b1, w2, w3, balancing_bias=False)
    y = jax.block_until_ready(y)
    y_ref = _reference_forward(x, w1, b1, w2, w3, balancing_bias=False)
    assert y.shape == (B, OUT)
    assert jnp.max(jnp.abs(y - y_ref)) < 5e-5, "mismatch vs reference (bias=False)"

    yb = general_logistic_nn_forward(x, w1, b1, w2, w3, balancing_bias=True)
    yb = jax.block_until_ready(yb)
    yb_ref = _reference_forward(x, w1, b1, w2, w3, balancing_bias=True)
    assert jnp.max(jnp.abs(yb - yb_ref)) < 5e-5, "mismatch vs reference (bias=True)"

    # --- ragged multi-block batch: exercises the >=2-block (megacore) path and
    #     the un-padded partial final block ---
    B2 = 600
    x2 = jax.random.normal(kx2, (B2, IN), dtype=jnp.float32)
    y2 = general_logistic_nn_forward(x2, w1, b1, w2, w3, balancing_bias=False)
    y2 = jax.block_until_ready(y2)
    y2_ref = _reference_forward(x2, w1, b1, w2, w3, balancing_bias=False)
    assert y2.shape == (B2, OUT)
    assert jnp.max(jnp.abs(y2 - y2_ref)) < 5e-5, "mismatch vs reference (ragged)"

    print("KERNEL_OK")
</pallas_src>

<mosaic_0001>
module attributes {stable_mosaic.version = 11 : i64} {
  func.func @_mlp_kernel(%arg0: i32, %arg1: memref<16x64xf32, #tpu.memory_space<vmem>>, %arg2: memref<32x16xf32, #tpu.memory_space<vmem>>, %arg3: memref<32x1xf32, #tpu.memory_space<vmem>>, %arg4: memref<32x32xf32, #tpu.memory_space<vmem>>, %arg5: memref<4x32xf32, #tpu.memory_space<vmem>>, %arg6: memref<4x64xf32, #tpu.memory_space<vmem>>) attributes {dimension_semantics = [#tpu.dimension_semantics<parallel>], iteration_bounds = array<i64: 1>, scalar_prefetch = 0 : i64, scratch_operands = 0 : i64, tpu.core_type = #tpu.core_type<tc>, window_params = [{transform_indices = @transform_0, window_bounds = array<i64: 16, 64>}, {pipeline_mode = #tpu.pipeline_mode<synchronous>, transform_indices = @transform_1, window_bounds = array<i64: 32, 16>}, {pipeline_mode = #tpu.pipeline_mode<synchronous>, transform_indices = @transform_2, window_bounds = array<i64: 32, 1>}, {pipeline_mode = #tpu.pipeline_mode<synchronous>, transform_indices = @transform_3, window_bounds = array<i64: 32, 32>}, {pipeline_mode = #tpu.pipeline_mode<synchronous>, transform_indices = @transform_4, window_bounds = array<i64: 4, 32>}, {transform_indices = @transform_5, window_bounds = array<i64: 4, 64>}]} {
    %c0 = arith.constant 0 : index
    %c0_0 = arith.constant 0 : index
    %0 = vector.load %arg1[%c0, %c0_0] : memref<16x64xf32, #tpu.memory_space<vmem>>, vector<16x64xf32>
    %c0_1 = arith.constant 0 : index
    %c0_2 = arith.constant 0 : index
    %1 = vector.load %arg2[%c0_1, %c0_2] : memref<32x16xf32, #tpu.memory_space<vmem>>, vector<32x16xf32>
    %cst = arith.constant dense<0.000000e+00> : vector<32x64xf32>
    %2 = tpu.matmul %1, %0, %cst {dimension_numbers = #tpu.dot_dimension_numbers<[1], [0], [0], [1], [0, 0, 1, 1], [], []>} : vector<32x16xf32>, vector<16x64xf32>, vector<32x64xf32> -> vector<32x64xf32>
    %c0_3 = arith.constant 0 : index
    %c0_4 = arith.constant 0 : index
    %3 = vector.load %arg3[%c0_3, %c0_4] : memref<32x1xf32, #tpu.memory_space<vmem>>, vector<32x1xf32>
    %4 = vector.broadcast %3 : vector<32x1xf32> to vector<32x64xf32>
    %5 = arith.addf %2, %4 : vector<32x64xf32>
    %cst_5 = arith.constant 5.000000e-01 : f32
    %6 = vector.broadcast %cst_5 : f32 to vector<32x64xf32>
    %7 = arith.mulf %6, %5 : vector<32x64xf32>
    %8 = math.tanh %7 : vector<32x64xf32>
    %cst_6 = arith.constant 5.000000e-01 : f32
    %9 = vector.broadcast %cst_6 : f32 to vector<32x64xf32>
    %10 = arith.mulf %9, %8 : vector<32x64xf32>
    %cst_7 = arith.constant 5.000000e-01 : f32
    %11 = vector.broadcast %cst_7 : f32 to vector<32x64xf32>
    %12 = arith.addf %10, %11 : vector<32x64xf32>
    %c0_8 = arith.constant 0 : index
    %c0_9 = arith.constant 0 : index
    %13 = vector.load %arg4[%c0_8, %c0_9] : memref<32x32xf32, #tpu.memory_space<vmem>>, vector<32x32xf32>
    %cst_10 = arith.constant dense<0.000000e+00> : vector<32x64xf32>
    %14 = tpu.matmul %13, %12, %cst_10 {dimension_numbers = #tpu.dot_dimension_numbers<[1], [0], [0], [1], [0, 0, 1, 1], [], []>} : vector<32x32xf32>, vector<32x64xf32>, vector<32x64xf32> -> vector<32x64xf32>
    %cst_11 = arith.constant 5.000000e-01 : f32
    %15 = vector.broadcast %cst_11 : f32 to vector<32x64xf32>
    %16 = arith.mulf %15, %14 : vector<32x64xf32>
    %17 = math.tanh %16 : vector<32x64xf32>
    %cst_12 = arith.constant 5.000000e-01 : f32
    %18 = vector.broadcast %cst_12 : f32 to vector<32x64xf32>
    %19 = arith.mulf %18, %17 : vector<32x64xf32>
    %cst_13 = arith.constant 5.000000e-01 : f32
    %20 = vector.broadcast %cst_13 : f32 to vector<32x64xf32>
    %21 = arith.addf %19, %20 : vector<32x64xf32>
    %c0_14 = arith.constant 0 : index
    %c0_15 = arith.constant 0 : index
    %22 = vector.load %arg5[%c0_14, %c0_15] : memref<4x32xf32, #tpu.memory_space<vmem>>, vector<4x32xf32>
    %cst_16 = arith.constant dense<0.000000e+00> : vector<4x64xf32>
    %23 = tpu.matmul %22, %21, %cst_16 {dimension_numbers = #tpu.dot_dimension_numbers<[1], [0], [0], [1], [0, 0, 1, 1], [], []>} : vector<4x32xf32>, vector<32x64xf32>, vector<4x64xf32> -> vector<4x64xf32>
    %cst_17 = arith.constant 5.000000e-01 : f32
    %24 = vector.broadcast %cst_17 : f32 to vector<4x64xf32>
    %25 = arith.mulf %24, %23 : vector<4x64xf32>
    %26 = math.tanh %25 : vector<4x64xf32>
    %cst_18 = arith.constant 5.000000e-01 : f32
    %27 = vector.broadcast %cst_18 : f32 to vector<4x64xf32>
    %28 = arith.mulf %27, %26 : vector<4x64xf32>
    %cst_19 = arith.constant 5.000000e-01 : f32
    %29 = vector.broadcast %cst_19 : f32 to vector<4x64xf32>
    %30 = arith.addf %28, %29 : vector<4x64xf32>
    %c0_20 = arith.constant 0 : index
    %c0_21 = arith.constant 0 : index
    %31 = vector.load %arg6[%c0_20, %c0_21] : memref<4x64xf32, #tpu.memory_space<vmem>>, vector<4x64xf32>
    tpu.vector_store %arg6[%c0_20, %c0_21], %30 {strides = array<i32>} : memref<4x64xf32, #tpu.memory_space<vmem>>, vector<4x64xf32>,
    return
  }
  func.func @transform_0(%arg0: i32) -> (i32, i32) {
    %c0_i32 = arith.constant 0 : i32
    %c0_i32_0 = arith.constant 0 : i32
    return %c0_i32, %arg0 : i32, i32
  }
  func.func @transform_1(%arg0: i32) -> (i32, i32) {
    %c0_i32 = arith.constant 0 : i32
    %c0_i32_0 = arith.constant 0 : i32
    %c0_i32_1 = arith.constant 0 : i32
    return %c0_i32, %c0_i32_0 : i32, i32
  }
  func.func @transform_2(%arg0: i32) -> (i32, i32) {
    %c0_i32 = arith.constant 0 : i32
    %c0_i32_0 = arith.constant 0 : i32
    %c0_i32_1 = arith.constant 0 : i32
    return %c0_i32, %c0_i32_0 : i32, i32
  }
  func.func @transform_3(%arg0: i32) -> (i32, i32) {
    %c0_i32 = arith.constant 0 : i32
    %c0_i32_0 = arith.constant 0 : i32
    %c0_i32_1 = arith.constant 0 : i32
    return %c0_i32, %c0_i32_0 : i32, i32
  }
  func.func @transform_4(%arg0: i32) -> (i32, i32) {
    %c0_i32 = arith.constant 0 : i32
    %c0_i32_0 = arith.constant 0 : i32
    %c0_i32_1 = arith.constant 0 : i32
    return %c0_i32, %c0_i32_0 : i32, i32
  }
  func.func @transform_5(%arg0: i32) -> (i32, i32) {
    %c0_i32 = arith.constant 0 : i32
    %c0_i32_0 = arith.constant 0 : i32
    return %c0_i32, %arg0 : i32, i32
  }
}

</mosaic_0001>

<llo_original>
// kernel: tpu_custom_call.1
$region0: #{tpu_custom_call.1}
  #allocation0 [shape = 'u32[]', space=smem, size = 0x4, offset = 0x4, fixed_abs, tag = 'smem constant byte address 0x4 - core index']
  #allocation1 [shape = 'u32[72,128]{1,0:T(1,128)}', space=vmem, size = 0x9000, scoped, tag = 'internal scratch']
  %s0 = inlined_call_operand.vmem [shape: f32[16,64], index: 0, kind: input, shape index: {}]
  %s1 = inlined_call_operand.vmem [shape: f32[32,16], index: 1, kind: input, shape index: {}]
  %s2 = inlined_call_operand.vmem [shape: f32[32,1], index: 2, kind: input, shape index: {}]
  %s3 = inlined_call_operand.vmem [shape: f32[32,32], index: 3, kind: input, shape index: {}]
  %s4 = inlined_call_operand.vmem [shape: f32[4,32], index: 4, kind: input, shape index: {}]
  %s5 = inlined_call_operand.hbm [shape: f32[4,64], index: 5, kind: output, shape index: {}]
  %s6 = sld [smem:[#allocation0]]
  $region30: #{tpu_custom_call.1} parent=0
    _
  %s8 = ssub.s32 1, %s6
  %s9 = scalar_select 0, %s8, %s6
  $region1: #{tpu_custom_call.1} parent=0
    #allocation2 [shape = 'u8[2048]{0}', space=vmem, size = 0x800, scoped, tag = 'output window, operand 0, single buffered']
    #allocation3 [shape = 's32[1]{0}', space=sflag, size = 0x4, scoped, tag = 'scoped memory for tpu_custom_call.1']
    %10 = vsyncpa [#allocation3], 0
    // Predicated region
    $region2: #{tpu_custom_call.1} parent=1 // pred_check
      _
    $region3: #{tpu_custom_call.1} parent=1 // pred_check_branch
      %12 = sbr.rel (0) target = $region5
    $region4: #{tpu_custom_call.1} parent=1 // pred_region
      _
    $region5: #{tpu_custom_call.1} parent=1 // pred_fallthru
      _
    // Predicated region
    $region6: #{tpu_custom_call.1} parent=1 // pred_check
      _
    $region7: #{tpu_custom_call.1} parent=1 // pred_check_branch
      %14 = sbr.rel (0) target = $region9
    $region8: #{tpu_custom_call.1} parent=1 // pred_region
      _
    $region9: #{tpu_custom_call.1} parent=1 // pred_fallthru
      _
    // Predicated region
    $region10: #{tpu_custom_call.1} parent=1 // pred_check
      _
    $region11: #{tpu_custom_call.1} parent=1 // pred_check_branch
      %16 = sbr.rel (0) target = $region13
    $region12: #{tpu_custom_call.1} parent=1 // pred_region
      _
    $region13: #{tpu_custom_call.1} parent=1 // pred_fallthru
      _
    // Predicated region
    $region14: #{tpu_custom_call.1} parent=1 // pred_check
      _
    $region15: #{tpu_custom_call.1} parent=1 // pred_check_branch
      %18 = sbr.rel (0) target = $region17
    $region16: #{tpu_custom_call.1} parent=1 // pred_region
      _
    $region17: #{tpu_custom_call.1} parent=1 // pred_fallthru
      _
    // Predicated region
    $region18: #{tpu_custom_call.1} parent=1 // pred_check
      _
    $region19: #{tpu_custom_call.1} parent=1 // pred_check_branch
      %20 = sbr.rel (0) target = $region21
    $region20: #{tpu_custom_call.1} parent=1 // pred_region
      _
    $region21: #{tpu_custom_call.1} parent=1 // pred_fallthru
      _
    %v21 = vld [vmem:[%s0] sm:$0xff]
    %v22 = vld [vmem:[%s0 + $0x8] sm:$0xff]
    %v23 = vld [vmem:[%s1] sm:$0xff]
    %v24 = vld [vmem:[%s1 + $0x8] sm:$0xff]
    %v25 = vld [vmem:[%s1 + $0x10] sm:$0xff]
    %v26 = vld [vmem:[%s1 + $0x18] sm:$0xff]
    %v27 = vld [vmem:[%s2] sm:$0xff]
    %v28 = vld [vmem:[%s2 + $0x8] sm:$0xff]
    %v29 = vld [vmem:[%s2 + $0x10] sm:$0xff]
    %v30 = vld [vmem:[%s2 + $0x18] sm:$0xff]
    %32 = vset.pattern.permute.xlu0 0
    %33 = vperm.xlu0 %32, %v27
    %v34 = vpop.permute.xlu0 %33
    %37 = vset.pattern.permute.xlu0 0
    %38 = vperm.xlu0 %37, %v28
    %v39 = vpop.permute.xlu0 %38
    %42 = vset.pattern.permute.xlu0 0
    %43 = vperm.xlu0 %42, %v29
    %v44 = vpop.permute.xlu0 %43
    %47 = vset.pattern.permute.xlu0 0
    %48 = vperm.xlu0 %47, %v30
    %v49 = vpop.permute.xlu0 %48
    %vm51 = vcmask 130048
    %v53 = vsel %vm51, %v23, 0
    %v56 = vsel %vm51, %v24, 0
    %v59 = vsel %vm51, %v25, 0
    %v62 = vsel %vm51, %v26, 0
    %64 = vmatpush.msra.mxu0 0.0
    %65 = vmatpush.msra.mxu0 0.0
    %66 = vmatpush.msra.mxu0 0.0
    %67 = vmatpush.msra.mxu0 0.0
    %68 = vmatpush.msra.mxu0 0.0
    %69 = vmatpush.msra.mxu0 0.0
    %70 = vmatpush.msra.mxu0 0.0
    %71 = vmatpush.msra.mxu0 0.0
    %72 = vmatpush.msra.mxu0 0.0
    %73 = vmatpush.msra.mxu0 0.0
    %74 = vmatpush.msra.mxu0 0.0
    %75 = vmatpush.msra.mxu0 0.0
    %76 = vmatpush.msra.mxu0 0.0
    %77 = vmatpush.msra.mxu0 0.0
    %78 = vmatpush.msra.mxu0 %v22
    %79 = vmatpush.msra.mxu0 %v21
    %80 = vmatmul.f32.gmra.mxu0 %v53
    %v81 = vpop.f32.mrf.mxu0
    %v82 = vadd.f32 %v34, %v81
    %83 = vmatmul.f32.gmra.mxu0 %v56
    %v84 = vpop.f32.mrf.mxu0
    %v85 = vadd.f32 %v39, %v84
    %86 = vmatmul.f32.gmra.mxu0 %v59
    %v87 = vpop.f32.mrf.mxu0
    %v88 = vadd.f32 %v44, %v87
    %89 = vmatmul.f32.gmra.mxu0 %v62
    %v90 = vpop.f32.mrf.mxu0
    %v91 = vadd.f32 %v49, %v90
    %92 = vdwg.mxu0
    %v93 = vmul.f32 %v82, 0.5
    %v94 = vmul.f32 %v85, 0.5
    %v95 = vmul.f32 %v88, 0.5
    %v96 = vmul.f32 %v91, 0.5
    %v97 = vtanh.pop %v93
    %v98 = vtanh.pop %v94
    %v99 = vtanh.pop %v95
    %v100 = vtanh.pop %v96
    %v101 = vmul.f32 %v97, 0.5
    %v102 = vmul.f32 %v98, 0.5
    %v103 = vmul.f32 %v99, 0.5
    %v104 = vmul.f32 %v100, 0.5
    %v105 = vadd.f32 %v101, 0.5
    %v106 = vadd.f32 %v102, 0.5
    %v107 = vadd.f32 %v103, 0.5
    %v108 = vadd.f32 %v104, 0.5
    %v109 = vld [vmem:[%s3] sm:$0xff]
    %v110 = vld [vmem:[%s3 + $0x8] sm:$0xff]
    %v111 = vld [vmem:[%s3 + $0x10] sm:$0xff]
    %v112 = vld [vmem:[%s3 + $0x18] sm:$0xff]
    %vm113 = vcmask 261120
    %v115 = vsel %vm113, %v109, 0
    %v118 = vsel %vm113, %v110, 0
    %v121 = vsel %vm113, %v111, 0
    %v124 = vsel %vm113, %v112, 0
    %126 = vmatpush.msra.mxu0 0.0
    %127 = vmatpush.msra.mxu0 0.0
    %128 = vmatpush.msra.mxu0 0.0
    %129 = vmatpush.msra.mxu0 0.0
    %130 = vmatpush.msra.mxu0 0.0
    %131 = vmatpush.msra.mxu0 0.0
    %132 = vmatpush.msra.mxu0 0.0
    %133 = vmatpush.msra.mxu0 0.0
    %134 = vmatpush.msra.mxu0 0.0
    %135 = vmatpush.msra.mxu0 0.0
    %136 = vmatpush.msra.mxu0 0.0
    %137 = vmatpush.msra.mxu0 0.0
    %138 = vmatpush.msra.mxu0 %v108
    %139 = vmatpush.msra.mxu0 %v107
    %140 = vmatpush.msra.mxu0 %v106
    %141 = vmatpush.msra.mxu0 %v105
    %142 = vmatmul.f32.gmra.mxu0 %v115
    %v143 = vpop.f32.mrf.mxu0
    %v144 = vadd.f32 0.0, %v143
    %145 = vmatmul.f32.gmra.mxu0 %v118
    %v146 = vpop.f32.mrf.mxu0
    %v147 = vadd.f32 0.0, %v146
    %148 = vmatmul.f32.gmra.mxu0 %v121
    %v149 = vpop.f32.mrf.mxu0
    %v150 = vadd.f32 0.0, %v149
    %151 = vmatmul.f32.gmra.mxu0 %v124
    %v152 = vpop.f32.mrf.mxu0
    %v153 = vadd.f32 0.0, %v152
    %154 = vdwg.mxu0
    %v155 = vmul.f32 %v144, 0.5
    %v156 = vmul.f32 %v147, 0.5
    %v157 = vmul.f32 %v150, 0.5
    %v158 = vmul.f32 %v153, 0.5
    %v159 = vtanh.pop %v155
    %v160 = vtanh.pop %v156
    %v161 = vtanh.pop %v157
    %v162 = vtanh.pop %v158
    %v163 = vmul.f32 %v159, 0.5
    %v164 = vmul.f32 %v160, 0.5
    %v165 = vmul.f32 %v161, 0.5
    %v166 = vmul.f32 %v162, 0.5
    %v167 = vadd.f32 %v163, 0.5
    %v168 = vadd.f32 %v164, 0.5
    %v169 = vadd.f32 %v165, 0.5
    %v170 = vadd.f32 %v166, 0.5
    %v171 = vld [vmem:[%s4] sm:$0xf]
    %v173 = vsel %vm113, %v171, 0
    %175 = vmatpush.msra.mxu0 0.0
    %176 = vmatpush.msra.mxu0 0.0
    %177 = vmatpush.msra.mxu0 0.0
    %178 = vmatpush.msra.mxu0 0.0
    %179 = vmatpush.msra.mxu0 0.0
    %180 = vmatpush.msra.mxu0 0.0
    %181 = vmatpush.msra.mxu0 0.0
    %182 = vmatpush.msra.mxu0 0.0
    %183 = vmatpush.msra.mxu0 0.0
    %184 = vmatpush.msra.mxu0 0.0
    %185 = vmatpush.msra.mxu0 0.0
    %186 = vmatpush.msra.mxu0 0.0
    %187 = vmatpush.msra.mxu0 %v170
    %188 = vmatpush.msra.mxu0 %v169
    %189 = vmatpush.msra.mxu0 %v168
    %190 = vmatpush.msra.mxu0 %v167
    %191 = vmatmul.f32.gmra.mxu0 %v173
    %v192 = vpop.f32.mrf.mxu0
    %v193 = vadd.f32 0.0, %v192
    %194 = vdwg.mxu0
    %v195 = vmul.f32 %v193, 0.5
    %v196 = vtanh.pop %v195
    %v197 = vmul.f32 %v196, 0.5
    %v198 = vadd.f32 %v197, 0.5
    %vm199 = vcmask 519168
    %200 = vst.msk [vmem:[#allocation2] sm:$0xf] %vm199, %v198
    // Predicated region
    $region22: #{tpu_custom_call.1} parent=1 // pred_check
      _
    $region23: #{tpu_custom_call.1} parent=1 // pred_check_branch
      %202 = sbr.rel (0) target = $region25
    $region24: #{tpu_custom_call.1} parent=1 // pred_region
      %204 = vsyncadd [#allocation3], 0
      %s206 = sshll.u32 [#allocation2], 4
      %s207 = int_to_ptr.vmem [resolvable:$true] %s206
      %s208 = sshll.u32 %s5, 4
      %s209 = int_to_ptr.hbm [resolvable:$true] %s208
      %211 = dma.vmem_to_hbm [thread:$0]  %s207, 64, %s209, [#allocation3]
    $region25: #{tpu_custom_call.1} parent=1 // pred_fallthru
      _
    // Predicated region
    $region26: #{tpu_custom_call.1} parent=1 // pred_check
      _
    $region27: #{tpu_custom_call.1} parent=1 // pred_check_branch
      %213 = sbr.rel (0) target = $region29
    $region28: #{tpu_custom_call.1} parent=1 // pred_region
      %215 = dma.done [#allocation3], 64
    $region29: #{tpu_custom_call.1} parent=1 // pred_fallthru
      _
    %216 = vsyncpa [#allocation3], 1

</llo_original>
